<compile_context>
chip_gen: v7x
topology: tpu7x:2x2x1
jax: 0.10.0
libtpu: 0.0.40
codegen_flags: <defaults>
</compile_context>

<pallas_src>
import jax
import jax.numpy as jnp
from jax.experimental import pallas as pl
from jax.experimental.pallas import tpu as pltpu


def _round_up(n, m):
    return (n + m - 1) // m * m


def _vmem_capacity_bytes():
    """Physical VMEM per core (64 MiB v7x, 128 MiB v5e/v6e); safe fallback."""
    try:
        cap = int(pltpu.get_tpu_info().vmem_capacity_bytes)
        if cap > 0:
            return cap
    except Exception:
        pass
    return 64 * 2**20  # conservative (v7x-sized) default


def fm_kernel(w0_ref, w1s_ref, wd_ref, rf_ref, rd_ref, x_ref, out_ref):
    """One packed batch tile.

    w0_ref  : [1]        scalar bias (SMEM)
    w1s_ref : [2, pF]    row 0 = w1 tiled p times, row 1 = 0.5*sum(w2^2) tiled
    wd_ref  : [pF, pD]   block-diagonal sqrt(0.5)*w2
    rf_ref  : [pF, p]    0/1 segment-sum matrix over the feature axis
    rd_ref  : [pD, p]    0/1 segment-sum matrix over the latent axis
    x_ref   : [tbp, pF]  p batch rows packed per lane row (native dtype)
    out_ref : [tbp, p]   out[r, i] = FM(x[p*r + i])
    """
    # TODO(synk): optionally feed the MXU bf16 operands (f32 accumulation) for
    # extra throughput on v5e/v6e once numerics are signed off; kept f32 math
    # to match the PyTorch reference exactly.
    x = x_ref[...].astype(jnp.float32)              # [tbp, pF]
    w1_t = w1s_ref[0:1, :]                          # [1, pF]
    s_t = w1s_ref[1:2, :]                           # [1, pF]

    # Single real MXU matmul, contraction K = pF (128 when F divides 128).
    y = jnp.dot(x, wd_ref[...], preferred_element_type=jnp.float32)       # [tbp, pD]

    # First-order term + second-order "diagonal" correction, per feature (VPU).
    lin = x * (w1_t - x * s_t)                                            # [tbp, pF]
    sq = y * y                                                            # [tbp, pD]

    # Lane-segment reductions as tiny NN matmuls against precomputed constants
    # (no per-step ones materialization, no transpose of the big operand).
    red = jnp.dot(lin, rf_ref[...], preferred_element_type=jnp.float32)   # [tbp, p]
    red = red + jnp.dot(sq, rd_ref[...], preferred_element_type=jnp.float32)

    out_ref[...] = (w0_ref[0] + red).astype(out_ref.dtype)


def fm_forward(x, w0, w1, w2, *, target_block_bytes=4 * 2**20):
    """x: [B, F] (any float dtype), w0: [1], w1: [F, 1], w2: [F, D] -> [B, 1] f32."""
    B, F = x.shape
    Fw, D = w2.shape
    assert Fw == F and w1.shape == (F, 1)

    w0 = jnp.asarray(w0, jnp.float32).reshape((1,))
    w1 = w1.astype(jnp.float32)
    w2 = w2.astype(jnp.float32)

    # ---- one-time, batch-independent weight prep (O(p^2 * F * D)) ------------
    p = max(1, 128 // F)                       # batch rows packed per lane row
    pF, pD = p * F, p * D

    w2s = w2 * (0.5 ** 0.5)                    # fold the 1/2 of the squared term
    s = 0.5 * jnp.sum(w2 * w2, axis=1)         # [F]; 1/2 folded here as well
    w1s = jnp.stack([jnp.tile(w1[:, 0], p), jnp.tile(s, p)], axis=0)       # [2, pF]
    wd = jnp.kron(jnp.eye(p, dtype=jnp.float32), w2s)                      # [pF, pD]
    rf = jnp.repeat(jnp.eye(p, dtype=jnp.float32), F, axis=0)              # [pF, p]
    rd = jnp.repeat(jnp.eye(p, dtype=jnp.float32), D, axis=0)              # [pD, p]

    # ---- pack x: [B, F] -> [Bp, p*F] (free row-major merge when B % p == 0) --
    rem = B % p
    if rem:
        # TODO(synk): this tiny p-granularity zero pad still costs one HBM pass
        # over x; callers with B % p == 0 (the common case) pay no copy at all.
        x = jnp.pad(x, ((0, p - rem), (0, 0)))
    Bp = x.shape[0] // p
    xp = x.reshape(Bp, pF)

    # ---- batch-tile sizing by bytes against an explicit VMEM budget ----------
    itemx = jnp.dtype(x.dtype).itemsize
    lanes_x = _round_up(pF, 128)
    lanes_y = _round_up(pD, 128)
    per_row = (2 * lanes_x * itemx             # double-buffered x block
               + 2 * 128 * 4                   # double-buffered out block (lane pad)
               + 2 * lanes_y * 4               # y and y*y temporaries (f32)
               + 2 * lanes_x * 4)              # lin temporary + f32 cast of x
    fixed = 8 * (_round_up(pF, 8) * lanes_y    # wd (2 buffers, 4 B)
                 + _round_up(pF, 8) * 128      # rf
                 + _round_up(pD, 8) * 128      # rd
                 + 8 * lanes_x)                # w1s

    cap = _vmem_capacity_bytes()
    budget = min(cap // 2, 64 * 2**20)         # ~half the v7x VMEM, capped elsewhere
    tbp_max = max(8, min(target_block_bytes // (lanes_x * itemx),
                         (budget - fixed) // per_row))

    if Bp <= 8:
        tbp = Bp                               # tiny batch: one full block
    else:
        tbp = min(tbp_max, (Bp + 1) // 2)      # keep >= 2 grid steps (v7x megacore)
        tbp = max(8, tbp // 8 * 8)             # sublane-aligned block rows
    grid_steps = (Bp + tbp - 1) // tbp         # ragged last block handled by Pallas

    est = fixed + per_row * tbp + 2 * 2**20
    vmem_limit = int(min(cap, max(32 * 2**20, est + 16 * 2**20)))

    out = pl.pallas_call(
        fm_kernel,
        out_shape=jax.ShapeDtypeStruct((Bp, p), jnp.float32),
        grid=(grid_steps,),
        in_specs=[
            pl.BlockSpec(memory_space=pltpu.MemorySpace.SMEM),   # w0 scalar
            pl.BlockSpec((2, pF), lambda i: (0, 0)),             # [w1 ; s] tiled
            pl.BlockSpec((pF, pD), lambda i: (0, 0)),            # block-diag w2'
            pl.BlockSpec((pF, p), lambda i: (0, 0)),             # feature reducer
            pl.BlockSpec((pD, p), lambda i: (0, 0)),             # latent reducer
            # TODO(synk): try pipeline_mode=pl.Buffered(3) on this spec for
            # v5e/v6e (few-% DMA-latency win) once validated on the target jax.
            pl.BlockSpec((tbp, pF), lambda i: (i, 0)),           # packed x tile
        ],
        out_specs=pl.BlockSpec((tbp, p), lambda i: (i, 0)),
        compiler_params=pltpu.CompilerParams(
            dimension_semantics=("parallel",),
            vmem_limit_bytes=vmem_limit),
    )(w0, w1s, wd, rf, rd, xp)

    # out[r, i] is batch row r*p + i; row-major reshape restores batch order.
    return out.reshape(-1, 1)[:B]


def fm_reference(x, w0, w1, w2):
    first = w0 + x @ w1
    second = 0.5 * jnp.sum((x @ w2) ** 2 - (x ** 2) @ (w2 ** 2),
                           axis=1, keepdims=True)
    return first + second


if __name__ == "__main__":
    fea_num = 16
    latent_dim = 32

    key = jax.random.PRNGKey(0)
    k1, k2, kx1, kx2, kx3 = jax.random.split(key, 5)

    # Deterministic parameters matching the torch module's shapes:
    #   w0 = zeros([1]); w1 ~ U[0,1) [fea_num, 1]; w2 ~ U[0,1) [fea_num, latent_dim]
    w0 = jnp.zeros((1,), dtype=jnp.float32)
    w1 = jax.random.uniform(k1, (fea_num, 1), dtype=jnp.float32)
    w2 = jax.random.uniform(k2, (fea_num, latent_dim), dtype=jnp.float32)

    # 1) Small single-tile case (B = 8 packs into one 128-lane row).
    x1 = jax.random.normal(kx1, (8, fea_num), dtype=jnp.float32)
    out1 = jax.block_until_ready(fm_forward(x1, w0, w1, w2))
    ref1 = fm_reference(x1, w0, w1, w2)
    assert out1.shape == (8, 1)
    assert jnp.allclose(out1, ref1, rtol=1e-4, atol=1e-4), (out1, ref1)

    # 2) Multi-tile + ragged case: B = 300 (B % 8 != 0, ragged last grid block);
    #    tiny target_block_bytes forces a 5-step grid.
    x2 = jax.random.normal(kx2, (300, fea_num), dtype=jnp.float32)
    out2 = jax.block_until_ready(
        fm_forward(x2, w0, w1, w2, target_block_bytes=4096))
    ref2 = fm_reference(x2, w0, w1, w2)
    assert out2.shape == (300, 1)
    assert jnp.allclose(out2, ref2, rtol=1e-4, atol=1e-4), (out2, ref2)

    # 3) Native-bf16 activations streamed with no wrapper astype (cast in-kernel).
    x3 = jax.random.normal(kx3, (64, fea_num), dtype=jnp.float32).astype(jnp.bfloat16)
    out3 = jax.block_until_ready(fm_forward(x3, w0, w1, w2))
    ref3 = fm_reference(x3.astype(jnp.float32), w0, w1, w2)
    assert out3.shape == (64, 1)
    assert jnp.allclose(out3, ref3, rtol=2e-3, atol=2e-3), (out3, ref3)

    print("KERNEL_OK")
</pallas_src>

<mosaic_0001>
module attributes {stable_mosaic.version = 11 : i64} {
  func.func @fm_kernel(%arg0: i32, %arg1: memref<1xf32, #tpu.memory_space<smem>>, %arg2: memref<2x128xf32, #tpu.memory_space<vmem>>, %arg3: memref<128x256xf32, #tpu.memory_space<vmem>>, %arg4: memref<128x8xf32, #tpu.memory_space<vmem>>, %arg5: memref<256x8xf32, #tpu.memory_space<vmem>>, %arg6: memref<1x128xf32, #tpu.memory_space<vmem>>, %arg7: memref<1x8xf32, #tpu.memory_space<vmem>>) attributes {dimension_semantics = [#tpu.dimension_semantics<parallel>], iteration_bounds = array<i64: 1>, scalar_prefetch = 0 : i64, scratch_operands = 0 : i64, tpu.core_type = #tpu.core_type<tc>, window_params = [{transform_indices = @transform_0, window_bounds = array<i64: 1>}, {pipeline_mode = #tpu.pipeline_mode<synchronous>, transform_indices = @transform_1, window_bounds = array<i64: 2, 128>}, {pipeline_mode = #tpu.pipeline_mode<synchronous>, transform_indices = @transform_2, window_bounds = array<i64: 128, 256>}, {pipeline_mode = #tpu.pipeline_mode<synchronous>, transform_indices = @transform_3, window_bounds = array<i64: 128, 8>}, {pipeline_mode = #tpu.pipeline_mode<synchronous>, transform_indices = @transform_4, window_bounds = array<i64: 256, 8>}, {transform_indices = @transform_5, window_bounds = array<i64: 1, 128>}, {transform_indices = @transform_6, window_bounds = array<i64: 1, 8>}]} {
    %c0 = arith.constant 0 : index
    %c0_0 = arith.constant 0 : index
    %0 = vector.load %arg6[%c0, %c0_0] : memref<1x128xf32, #tpu.memory_space<vmem>>, vector<1x128xf32>
    %c0_1 = arith.constant 0 : index
    %c0_2 = arith.constant 0 : index
    %1 = vector.load %arg2[%c0_1, %c0_2] : memref<2x128xf32, #tpu.memory_space<vmem>>, vector<1x128xf32>
    %c1 = arith.constant 1 : index
    %c0_3 = arith.constant 0 : index
    %2 = vector.load %arg2[%c1, %c0_3] : memref<2x128xf32, #tpu.memory_space<vmem>>, vector<1x128xf32>
    %c0_4 = arith.constant 0 : index
    %c0_5 = arith.constant 0 : index
    %3 = vector.load %arg3[%c0_4, %c0_5] : memref<128x256xf32, #tpu.memory_space<vmem>>, vector<128x256xf32>
    %cst = arith.constant dense<0.000000e+00> : vector<1x256xf32>
    %4 = tpu.matmul %0, %3, %cst {dimension_numbers = #tpu.dot_dimension_numbers<[1], [0], [0], [1], [0, 0, 1, 1], [], []>} : vector<1x128xf32>, vector<128x256xf32>, vector<1x256xf32> -> vector<1x256xf32>
    %5 = arith.mulf %0, %2 : vector<1x128xf32>
    %6 = arith.subf %1, %5 : vector<1x128xf32>
    %7 = arith.mulf %0, %6 : vector<1x128xf32>
    %8 = arith.mulf %4, %4 : vector<1x256xf32>
    %c0_6 = arith.constant 0 : index
    %c0_7 = arith.constant 0 : index
    %9 = vector.load %arg4[%c0_6, %c0_7] : memref<128x8xf32, #tpu.memory_space<vmem>>, vector<128x8xf32>
    %cst_8 = arith.constant dense<0.000000e+00> : vector<1x8xf32>
    %10 = tpu.matmul %7, %9, %cst_8 {dimension_numbers = #tpu.dot_dimension_numbers<[1], [0], [0], [1], [0, 0, 1, 1], [], []>} : vector<1x128xf32>, vector<128x8xf32>, vector<1x8xf32> -> vector<1x8xf32>
    %c0_9 = arith.constant 0 : index
    %c0_10 = arith.constant 0 : index
    %11 = vector.load %arg5[%c0_9, %c0_10] : memref<256x8xf32, #tpu.memory_space<vmem>>, vector<256x8xf32>
    %cst_11 = arith.constant dense<0.000000e+00> : vector<1x8xf32>
    %12 = tpu.matmul %8, %11, %cst_11 {dimension_numbers = #tpu.dot_dimension_numbers<[1], [0], [0], [1], [0, 0, 1, 1], [], []>} : vector<1x256xf32>, vector<256x8xf32>, vector<1x8xf32> -> vector<1x8xf32>
    %13 = arith.addf %10, %12 : vector<1x8xf32>
    %c0_12 = arith.constant 0 : index
    %14 = memref.load %arg1[%c0_12] : memref<1xf32, #tpu.memory_space<smem>>
    %15 = vector.broadcast %14 : f32 to vector<1x8xf32>
    %16 = arith.addf %15, %13 : vector<1x8xf32>
    %c0_13 = arith.constant 0 : index
    %c0_14 = arith.constant 0 : index
    %17 = vector.load %arg7[%c0_13, %c0_14] : memref<1x8xf32, #tpu.memory_space<vmem>>, vector<1x8xf32>
    tpu.vector_store %arg7[%c0_13, %c0_14], %16 {strides = array<i32>} : memref<1x8xf32, #tpu.memory_space<vmem>>, vector<1x8xf32>,
    return
  }
  func.func @transform_0(%arg0: i32) -> i32 {
    %c0_i32 = arith.constant 0 : i32
    %c0_i32_0 = arith.constant 0 : i32
    return %c0_i32 : i32
  }
  func.func @transform_1(%arg0: i32) -> (i32, i32) {
    %c0_i32 = arith.constant 0 : i32
    %c0_i32_0 = arith.constant 0 : i32
    %c0_i32_1 = arith.constant 0 : i32
    return %c0_i32, %c0_i32_0 : i32, i32
  }
  func.func @transform_2(%arg0: i32) -> (i32, i32) {
    %c0_i32 = arith.constant 0 : i32
    %c0_i32_0 = arith.constant 0 : i32
    %c0_i32_1 = arith.constant 0 : i32
    return %c0_i32, %c0_i32_0 : i32, i32
  }
  func.func @transform_3(%arg0: i32) -> (i32, i32) {
    %c0_i32 = arith.constant 0 : i32
    %c0_i32_0 = arith.constant 0 : i32
    %c0_i32_1 = arith.constant 0 : i32
    return %c0_i32, %c0_i32_0 : i32, i32
  }
  func.func @transform_4(%arg0: i32) -> (i32, i32) {
    %c0_i32 = arith.constant 0 : i32
    %c0_i32_0 = arith.constant 0 : i32
    %c0_i32_1 = arith.constant 0 : i32
    return %c0_i32, %c0_i32_0 : i32, i32
  }
  func.func @transform_5(%arg0: i32) -> (i32, i32) {
    %c0_i32 = arith.constant 0 : i32
    %c0_i32_0 = arith.constant 0 : i32
    return %arg0, %c0_i32 : i32, i32
  }
  func.func @transform_6(%arg0: i32) -> (i32, i32) {
    %c0_i32 = arith.constant 0 : i32
    %c0_i32_0 = arith.constant 0 : i32
    return %arg0, %c0_i32 : i32, i32
  }
}

</mosaic_0001>

<llo_original>
// kernel: tpu_custom_call.1
$region0: #{tpu_custom_call.1}
  #allocation0 [shape = 'u32[]', space=smem, size = 0x4, offset = 0x4, fixed_abs, tag = 'smem constant byte address 0x4 - core index']
  #allocation1 [shape = 'u32[144,128]{1,0:T(1,128)}', space=vmem, size = 0x12000, scoped, tag = 'internal scratch']
  #allocation2 [shape = 'f32[1]{0:T(128)S(6)}', space=smem, size = 0x200, scoped, tag = 'scoped memory for tpu_custom_call.1']
  %s0 = inlined_call_operand.<no memory space> [shape: f32[1], index: 0, kind: input, shape index: {}]
  %s1 = inlined_call_operand.vmem [shape: f32[2,128], index: 1, kind: input, shape index: {}]
  %s2 = inlined_call_operand.vmem [shape: f32[128,256], index: 2, kind: input, shape index: {}]
  %s3 = inlined_call_operand.vmem [shape: f32[128,8], index: 3, kind: input, shape index: {}]
  %s4 = inlined_call_operand.vmem [shape: f32[256,8], index: 4, kind: input, shape index: {}]
  %s5 = inlined_call_operand.vmem [shape: f32[1,128], index: 5, kind: input, shape index: {}]
  %s6 = inlined_call_operand.hbm [shape: f32[1,8], index: 6, kind: output, shape index: {}]
  %s7 = sld [smem:[#allocation0]]
  $region34: #{tpu_custom_call.1} parent=0
    _
  %s9 = ssub.s32 1, %s7
  %s10 = scalar_select 0, %s9, %s7
  %11 = sst [smem:[#allocation2]] %s0
  $region1: #{tpu_custom_call.1} parent=0
    #allocation3 [shape = 'u8[512]{0}', space=vmem, size = 0x400, scoped, tag = 'output window, operand 0, single buffered']
    #allocation4 [shape = 's32[1]{0}', space=sflag, size = 0x4, scoped, tag = 'scoped memory for tpu_custom_call.1']
    %12 = vsyncpa [#allocation4], 0
    // Predicated region
    $region2: #{tpu_custom_call.1} parent=1 // pred_check
      _
    $region3: #{tpu_custom_call.1} parent=1 // pred_check_branch
      %14 = sbr.rel (0) target = $region5
    $region4: #{tpu_custom_call.1} parent=1 // pred_region
      _
    $region5: #{tpu_custom_call.1} parent=1 // pred_fallthru
      _
    // Predicated region
    $region6: #{tpu_custom_call.1} parent=1 // pred_check
      _
    $region7: #{tpu_custom_call.1} parent=1 // pred_check_branch
      %16 = sbr.rel (0) target = $region9
    $region8: #{tpu_custom_call.1} parent=1 // pred_region
      _
    $region9: #{tpu_custom_call.1} parent=1 // pred_fallthru
      _
    // Predicated region
    $region10: #{tpu_custom_call.1} parent=1 // pred_check
      _
    $region11: #{tpu_custom_call.1} parent=1 // pred_check_branch
      %18 = sbr.rel (0) target = $region13
    $region12: #{tpu_custom_call.1} parent=1 // pred_region
      _
    $region13: #{tpu_custom_call.1} parent=1 // pred_fallthru
      _
    // Predicated region
    $region14: #{tpu_custom_call.1} parent=1 // pred_check
      _
    $region15: #{tpu_custom_call.1} parent=1 // pred_check_branch
      %20 = sbr.rel (0) target = $region17
    $region16: #{tpu_custom_call.1} parent=1 // pred_region
      _
    $region17: #{tpu_custom_call.1} parent=1 // pred_fallthru
      _
    // Predicated region
    $region18: #{tpu_custom_call.1} parent=1 // pred_check
      _
    $region19: #{tpu_custom_call.1} parent=1 // pred_check_branch
      %22 = sbr.rel (0) target = $region21
    $region20: #{tpu_custom_call.1} parent=1 // pred_region
      _
    $region21: #{tpu_custom_call.1} parent=1 // pred_fallthru
      _
    // Predicated region
    $region22: #{tpu_custom_call.1} parent=1 // pred_check
      _
    $region23: #{tpu_custom_call.1} parent=1 // pred_check_branch
      %24 = sbr.rel (0) target = $region25
    $region24: #{tpu_custom_call.1} parent=1 // pred_region
      _
    $region25: #{tpu_custom_call.1} parent=1 // pred_fallthru
      _
    %v25 = vld [vmem:[%s5] sm:$0x1]
    %v26 = vld [vmem:[%s1] sm:$0x1]
    %v27 = vld [vmem:[%s1 + $0x1] sm:$0x1]
    %v28 = vld [vmem:[%s2] sm:$0xff]
    %v29 = vld [vmem:[%s2 + $0x8] sm:$0xff]
    %v30 = vld [vmem:[%s2 + $0x10] sm:$0xff]
    %v31 = vld [vmem:[%s2 + $0x18] sm:$0xff]
    %v32 = vld [vmem:[%s2 + $0x20] sm:$0xff]
    %v33 = vld [vmem:[%s2 + $0x28] sm:$0xff]
    %v34 = vld [vmem:[%s2 + $0x30] sm:$0xff]
    %v35 = vld [vmem:[%s2 + $0x38] sm:$0xff]
    %v36 = vld [vmem:[%s2 + $0x40] sm:$0xff]
    %v37 = vld [vmem:[%s2 + $0x48] sm:$0xff]
    %v38 = vld [vmem:[%s2 + $0x50] sm:$0xff]
    %v39 = vld [vmem:[%s2 + $0x58] sm:$0xff]
    %v40 = vld [vmem:[%s2 + $0x60] sm:$0xff]
    %v41 = vld [vmem:[%s2 + $0x68] sm:$0xff]
    %v42 = vld [vmem:[%s2 + $0x70] sm:$0xff]
    %v43 = vld [vmem:[%s2 + $0x78] sm:$0xff]
    %v44 = vld [vmem:[%s2 + $0x80] sm:$0xff]
    %v45 = vld [vmem:[%s2 + $0x88] sm:$0xff]
    %v46 = vld [vmem:[%s2 + $0x90] sm:$0xff]
    %v47 = vld [vmem:[%s2 + $0x98] sm:$0xff]
    %v48 = vld [vmem:[%s2 + $0xa0] sm:$0xff]
    %v49 = vld [vmem:[%s2 + $0xa8] sm:$0xff]
    %v50 = vld [vmem:[%s2 + $0xb0] sm:$0xff]
    %v51 = vld [vmem:[%s2 + $0xb8] sm:$0xff]
    %v52 = vld [vmem:[%s2 + $0xc0] sm:$0xff]
    %v53 = vld [vmem:[%s2 + $0xc8] sm:$0xff]
    %v54 = vld [vmem:[%s2 + $0xd0] sm:$0xff]
    %v55 = vld [vmem:[%s2 + $0xd8] sm:$0xff]
    %v56 = vld [vmem:[%s2 + $0xe0] sm:$0xff]
    %v57 = vld [vmem:[%s2 + $0xe8] sm:$0xff]
    %v58 = vld [vmem:[%s2 + $0xf0] sm:$0xff]
    %v59 = vld [vmem:[%s2 + $0xf8] sm:$0xff]
    %60 = vmatprep.subr.mxu0 %v29
    %61 = vmatpush1.msra.mxu0 %v28
    %62 = vmatprep.subr.mxu0 %v31
    %63 = vmatpush1.msra.mxu0 %v30
    %64 = vmatprep.subr.mxu0 %v33
    %65 = vmatpush1.msra.mxu0 %v32
    %66 = vmatprep.subr.mxu0 %v35
    %67 = vmatpush1.msra.mxu0 %v34
    %68 = vmatprep.subr.mxu0 %v37
    %69 = vmatpush1.msra.mxu0 %v36
    %70 = vmatprep.subr.mxu0 %v39
    %71 = vmatpush1.msra.mxu0 %v38
    %72 = vmatprep.subr.mxu0 %v41
    %73 = vmatpush1.msra.mxu0 %v40
    %74 = vmatprep.subr.mxu0 %v43
    %75 = vmatpush1.msra.mxu0 %v42
    %76 = vmatprep.subr.mxu0 %v45
    %77 = vmatpush1.msra.mxu0 %v44
    %78 = vmatprep.subr.mxu0 %v47
    %79 = vmatpush1.msra.mxu0 %v46
    %80 = vmatprep.subr.mxu0 %v49
    %81 = vmatpush1.msra.mxu0 %v48
    %82 = vmatprep.subr.mxu0 %v51
    %83 = vmatpush1.msra.mxu0 %v50
    %84 = vmatprep.subr.mxu0 %v53
    %85 = vmatpush1.msra.mxu0 %v52
    %86 = vmatprep.subr.mxu0 %v55
    %87 = vmatpush1.msra.mxu0 %v54
    %88 = vmatprep.subr.mxu0 %v57
    %89 = vmatpush1.msra.mxu0 %v56
    %90 = vmatprep.subr.mxu0 %v59
    %91 = vmatpush1.msra.mxu0 %v58
    %92 = vmatprep.subr.mxu0 0.0
    %93 = vmatpush1.msra.mxu0 0.0
    %94 = vmatprep.subr.mxu0 0.0
    %95 = vmatpush1.msra.mxu0 0.0
    %96 = vmatprep.subr.mxu0 0.0
    %97 = vmatpush1.msra.mxu0 0.0
    %98 = vmatprep.subr.mxu0 0.0
    %99 = vmatpush1.msra.mxu0 0.0
    %100 = vmatprep.subr.mxu0 0.0
    %101 = vmatpush1.msra.mxu0 0.0
    %102 = vmatprep.subr.mxu0 0.0
    %103 = vmatpush1.msra.mxu0 0.0
    %104 = vmatprep.subr.mxu0 0.0
    %105 = vmatpush1.msra.mxu0 0.0
    %106 = vmatprep.subr.mxu0 0.0
    %107 = vmatpush1.msra.mxu0 0.0
    %108 = vmatprep.subr.mxu0 0.0
    %109 = vmatpush1.msra.mxu0 0.0
    %110 = vmatprep.subr.mxu0 0.0
    %111 = vmatpush1.msra.mxu0 0.0
    %112 = vmatprep.subr.mxu0 0.0
    %113 = vmatpush1.msra.mxu0 0.0
    %114 = vmatprep.subr.mxu0 0.0
    %115 = vmatpush1.msra.mxu0 0.0
    %116 = vmatprep.subr.mxu0 0.0
    %117 = vmatpush1.msra.mxu0 0.0
    %118 = vmatprep.subr.mxu0 0.0
    %119 = vmatpush1.msra.mxu0 0.0
    %120 = vmatprep.subr.mxu0 0.0
    %121 = vmatpush1.msra.mxu0 0.0
    %122 = vmatprep.subr.mxu0 0.0
    %123 = vmatpush1.msra.mxu0 0.0
    %124 = vmatprep.mubr.f32.mxu0 0.0
    %125 = vmatmul.mubr.f32.gmra.mrb[0].mxu0 %v25
    %v126 = vpop.f32.mrb[0].mxu0
    %v127 = vadd.f32 0.0, %v126
    %v128 = vpop.f32.mrb[0].mxu0
    %v129 = vadd.f32 0.0, %v128
    %130 = vdwg.mxu0
    %v131 = vmul.f32 %v25, %v27
    %v132 = vsub.f32 %v26, %v131
    %v133 = vmul.f32 %v25, %v132
    %v134 = vmul.f32 %v127, %v127
    %v135 = vmul.f32 %v129, %v129
    %v136 = vld [vmem:[%s3] sm:$0xff]
    %v137 = vld [vmem:[%s3 + $0x8] sm:$0xff]
    %v138 = vld [vmem:[%s3 + $0x10] sm:$0xff]
    %v139 = vld [vmem:[%s3 + $0x18] sm:$0xff]
    %v140 = vld [vmem:[%s3 + $0x20] sm:$0xff]
    %v141 = vld [vmem:[%s3 + $0x28] sm:$0xff]
    %v142 = vld [vmem:[%s3 + $0x30] sm:$0xff]
    %v143 = vld [vmem:[%s3 + $0x38] sm:$0xff]
    %v144 = vld [vmem:[%s3 + $0x40] sm:$0xff]
    %v145 = vld [vmem:[%s3 + $0x48] sm:$0xff]
    %v146 = vld [vmem:[%s3 + $0x50] sm:$0xff]
    %v147 = vld [vmem:[%s3 + $0x58] sm:$0xff]
    %v148 = vld [vmem:[%s3 + $0x60] sm:$0xff]
    %v149 = vld [vmem:[%s3 + $0x68] sm:$0xff]
    %v150 = vld [vmem:[%s3 + $0x70] sm:$0xff]
    %v151 = vld [vmem:[%s3 + $0x78] sm:$0xff]
    %v152 = vld [vmem:[%s4] sm:$0xff]
    %v153 = vld [vmem:[%s4 + $0x8] sm:$0xff]
    %v154 = vld [vmem:[%s4 + $0x10] sm:$0xff]
    %v155 = vld [vmem:[%s4 + $0x18] sm:$0xff]
    %v156 = vld [vmem:[%s4 + $0x20] sm:$0xff]
    %v157 = vld [vmem:[%s4 + $0x28] sm:$0xff]
    %v158 = vld [vmem:[%s4 + $0x30] sm:$0xff]
    %v159 = vld [vmem:[%s4 + $0x38] sm:$0xff]
    %v160 = vld [vmem:[%s4 + $0x40] sm:$0xff]
    %v161 = vld [vmem:[%s4 + $0x48] sm:$0xff]
    %v162 = vld [vmem:[%s4 + $0x50] sm:$0xff]
    %v163 = vld [vmem:[%s4 + $0x58] sm:$0xff]
    %v164 = vld [vmem:[%s4 + $0x60] sm:$0xff]
    %v165 = vld [vmem:[%s4 + $0x68] sm:$0xff]
    %v166 = vld [vmem:[%s4 + $0x70] sm:$0xff]
    %v167 = vld [vmem:[%s4 + $0x78] sm:$0xff]
    %v168 = vld [vmem:[%s4 + $0x80] sm:$0xff]
    %v169 = vld [vmem:[%s4 + $0x88] sm:$0xff]
    %v170 = vld [vmem:[%s4 + $0x90] sm:$0xff]
    %v171 = vld [vmem:[%s4 + $0x98] sm:$0xff]
    %v172 = vld [vmem:[%s4 + $0xa0] sm:$0xff]
    %v173 = vld [vmem:[%s4 + $0xa8] sm:$0xff]
    %v174 = vld [vmem:[%s4 + $0xb0] sm:$0xff]
    %v175 = vld [vmem:[%s4 + $0xb8] sm:$0xff]
    %v176 = vld [vmem:[%s4 + $0xc0] sm:$0xff]
    %v177 = vld [vmem:[%s4 + $0xc8] sm:$0xff]
    %v178 = vld [vmem:[%s4 + $0xd0] sm:$0xff]
    %v179 = vld [vmem:[%s4 + $0xd8] sm:$0xff]
    %v180 = vld [vmem:[%s4 + $0xe0] sm:$0xff]
    %v181 = vld [vmem:[%s4 + $0xe8] sm:$0xff]
    %v182 = vld [vmem:[%s4 + $0xf0] sm:$0xff]
    %v183 = vld [vmem:[%s4 + $0xf8] sm:$0xff]
    %184 = vmatprep.subr.mxu0 0.0
    %185 = vmatpush1.msra.mxu0 %v152
    %186 = vmatprep.subr.mxu0 0.0
    %187 = vmatpush1.msra.mxu0 %v153
    %188 = vmatprep.subr.mxu0 0.0
    %189 = vmatpush1.msra.mxu0 %v154
    %190 = vmatprep.subr.mxu0 0.0
    %191 = vmatpush1.msra.mxu0 %v155
    %192 = vmatprep.subr.mxu0 0.0
    %193 = vmatpush1.msra.mxu0 %v156
    %194 = vmatprep.subr.mxu0 0.0
    %195 = vmatpush1.msra.mxu0 %v157
    %196 = vmatprep.subr.mxu0 0.0
    %197 = vmatpush1.msra.mxu0 %v158
    %198 = vmatprep.subr.mxu0 0.0
    %199 = vmatpush1.msra.mxu0 %v159
    %200 = vmatprep.subr.mxu0 0.0
    %201 = vmatpush1.msra.mxu0 %v160
    %202 = vmatprep.subr.mxu0 0.0
    %203 = vmatpush1.msra.mxu0 %v161
    %204 = vmatprep.subr.mxu0 0.0
    %205 = vmatpush1.msra.mxu0 %v162
    %206 = vmatprep.subr.mxu0 0.0
    %207 = vmatpush1.msra.mxu0 %v163
    %208 = vmatprep.subr.mxu0 0.0
    %209 = vmatpush1.msra.mxu0 %v164
    %210 = vmatprep.subr.mxu0 0.0
    %211 = vmatpush1.msra.mxu0 %v165
    %212 = vmatprep.subr.mxu0 0.0
    %213 = vmatpush1.msra.mxu0 %v166
    %214 = vmatprep.subr.mxu0 0.0
    %215 = vmatpush1.msra.mxu0 %v167
    %216 = vmatprep.subr.mxu0 0.0
    %217 = vmatpush1.msra.mxu0 %v168
    %218 = vmatprep.subr.mxu0 0.0
    %219 = vmatpush1.msra.mxu0 %v169
    %220 = vmatprep.subr.mxu0 0.0
    %221 = vmatpush1.msra.mxu0 %v170
    %222 = vmatprep.subr.mxu0 0.0
    %223 = vmatpush1.msra.mxu0 %v171
    %224 = vmatprep.subr.mxu0 0.0
    %225 = vmatpush1.msra.mxu0 %v172
    %226 = vmatprep.subr.mxu0 0.0
    %227 = vmatpush1.msra.mxu0 %v173
    %228 = vmatprep.subr.mxu0 0.0
    %229 = vmatpush1.msra.mxu0 %v174
    %230 = vmatprep.subr.mxu0 0.0
    %231 = vmatpush1.msra.mxu0 %v175
    %232 = vmatprep.subr.mxu0 0.0
    %233 = vmatpush1.msra.mxu0 %v176
    %234 = vmatprep.subr.mxu0 0.0
    %235 = vmatpush1.msra.mxu0 %v177
    %236 = vmatprep.subr.mxu0 0.0
    %237 = vmatpush1.msra.mxu0 %v178
    %238 = vmatprep.subr.mxu0 0.0
    %239 = vmatpush1.msra.mxu0 %v179
    %240 = vmatprep.subr.mxu0 0.0
    %241 = vmatpush1.msra.mxu0 %v180
    %242 = vmatprep.subr.mxu0 0.0
    %243 = vmatpush1.msra.mxu0 %v181
    %244 = vmatprep.subr.mxu0 0.0
    %245 = vmatpush1.msra.mxu0 %v182
    %246 = vmatprep.subr.mxu0 0.0
    %247 = vmatpush1.msra.mxu0 %v183
    %248 = vmatprep.mubr.f32.mxu0 %v135
    %249 = vmatmul.mubr.f32.gmra.mrb[0].mxu0 %v134
    %v250 = vpop.f32.mrb[0].mxu0
    %v251 = vadd.f32 0.0, %v250
    %v252 = vpop.f32.mrb[0].mxu0
    %253 = vdwg.mxu0
    %254 = vmatprep.subr.mxu0 0.0
    %255 = vmatpush1.msra.mxu0 %v136
    %256 = vmatprep.subr.mxu0 0.0
    %257 = vmatpush1.msra.mxu0 %v137
    %258 = vmatprep.subr.mxu0 0.0
    %259 = vmatpush1.msra.mxu0 %v138
    %260 = vmatprep.subr.mxu0 0.0
    %261 = vmatpush1.msra.mxu0 %v139
    %262 = vmatprep.subr.mxu0 0.0
    %263 = vmatpush1.msra.mxu0 %v140
    %264 = vmatprep.subr.mxu0 0.0
    %265 = vmatpush1.msra.mxu0 %v141
    %266 = vmatprep.subr.mxu0 0.0
    %267 = vmatpush1.msra.mxu0 %v142
    %268 = vmatprep.subr.mxu0 0.0
    %269 = vmatpush1.msra.mxu0 %v143
    %270 = vmatprep.subr.mxu0 0.0
    %271 = vmatpush1.msra.mxu0 %v144
    %272 = vmatprep.subr.mxu0 0.0
    %273 = vmatpush1.msra.mxu0 %v145
    %274 = vmatprep.subr.mxu0 0.0
    %275 = vmatpush1.msra.mxu0 %v146
    %276 = vmatprep.subr.mxu0 0.0
    %277 = vmatpush1.msra.mxu0 %v147
    %278 = vmatprep.subr.mxu0 0.0
    %279 = vmatpush1.msra.mxu0 %v148
    %280 = vmatprep.subr.mxu0 0.0
    %281 = vmatpush1.msra.mxu0 %v149
    %282 = vmatprep.subr.mxu0 0.0
    %283 = vmatpush1.msra.mxu0 %v150
    %284 = vmatprep.subr.mxu0 0.0
    %285 = vmatpush1.msra.mxu0 %v151
    %286 = vmatprep.subr.mxu0 0.0
    %287 = vmatpush1.msra.mxu0 0.0
    %288 = vmatprep.subr.mxu0 0.0
    %289 = vmatpush1.msra.mxu0 0.0
    %290 = vmatprep.subr.mxu0 0.0
    %291 = vmatpush1.msra.mxu0 0.0
    %292 = vmatprep.subr.mxu0 0.0
    %293 = vmatpush1.msra.mxu0 0.0
    %294 = vmatprep.subr.mxu0 0.0
    %295 = vmatpush1.msra.mxu0 0.0
    %296 = vmatprep.subr.mxu0 0.0
    %297 = vmatpush1.msra.mxu0 0.0
    %298 = vmatprep.subr.mxu0 0.0
    %299 = vmatpush1.msra.mxu0 0.0
    %300 = vmatprep.subr.mxu0 0.0
    %301 = vmatpush1.msra.mxu0 0.0
    %302 = vmatprep.subr.mxu0 0.0
    %303 = vmatpush1.msra.mxu0 0.0
    %304 = vmatprep.subr.mxu0 0.0
    %305 = vmatpush1.msra.mxu0 0.0
    %306 = vmatprep.subr.mxu0 0.0
    %307 = vmatpush1.msra.mxu0 0.0
    %308 = vmatprep.subr.mxu0 0.0
    %309 = vmatpush1.msra.mxu0 0.0
    %310 = vmatprep.subr.mxu0 0.0
    %311 = vmatpush1.msra.mxu0 0.0
    %312 = vmatprep.subr.mxu0 0.0
    %313 = vmatpush1.msra.mxu0 0.0
    %314 = vmatprep.subr.mxu0 0.0
    %315 = vmatpush1.msra.mxu0 0.0
    %316 = vmatprep.subr.mxu0 0.0
    %317 = vmatpush1.msra.mxu0 0.0
    %318 = vmatprep.mubr.f32.mxu0 0.0
    %319 = vmatmul.mubr.f32.gmra.mrb[0].mxu0 %v133
    %v320 = vpop.f32.mrb[0].mxu0
    %v321 = vadd.f32 %v251, %v320
    %v322 = vpop.f32.mrb[0].mxu0
    %323 = vdwg.mxu0
    %s324 = sld [smem:[#allocation2]]
    %v325 = vstv %s324
    %v326 = vadd.f32 %v325, %v321
    %vm327 = vcmask 57344
    %328 = vst.msk [vmem:[#allocation3] sm:$0x1] %vm327, %v326
    // Predicated region
    $region26: #{tpu_custom_call.1} parent=1 // pred_check
      _
    $region27: #{tpu_custom_call.1} parent=1 // pred_check_branch
      %330 = sbr.rel (0) target = $region29
    $region28: #{tpu_custom_call.1} parent=1 // pred_region
      %s332 = ssub.s32 16, 16
      %333 = vsyncadd [#allocation4], %s332
      %s335 = sshll.u32 [#allocation3], 4
      %s336 = int_to_ptr.vmem [resolvable:$true] %s335
      %338 = dma.vmem_to_hbm [thread:$0]  %s336, 16, %s6, [#allocation4]
    $region29: #{tpu_custom_call.1} parent=1 // pred_fallthru
      _
    // Predicated region
    $region30: #{tpu_custom_call.1} parent=1 // pred_check
      _
    $region31: #{tpu_custom_call.1} parent=1 // pred_check_branch
      %340 = sbr.rel (0) target = $region33
    $region32: #{tpu_custom_call.1} parent=1 // pred_region
      %341 = dma.done [#allocation4], 16
    $region33: #{tpu_custom_call.1} parent=1 // pred_fallthru
      _
    %342 = vsyncpa [#allocation4], 1

</llo_original>
